<compile_context>
chip_gen: v7x
topology: tpu7x:2x2x1
jax: 0.10.0
libtpu: 0.0.40
codegen_flags: <defaults>
</compile_context>

<pallas_src>
import functools

import jax
import jax.numpy as jnp
import numpy as np
from jax.experimental import pallas as pl
from jax.experimental.pallas import tpu as pltpu


def _round_up(x, m):
    return ((x + m - 1) // m) * m


# ----------------------------------------------------------------------------
# Parameter construction (deterministic, mirrors SDFNetwork.__init__; weights
# are kept in torch Linear layout [out, in], biases as [out]).
# ----------------------------------------------------------------------------
def build_sdf_params(key, d_in_1, d_in_2, d_out, d_hidden, n_layers,
                     skip_in=(2,), bias=0.5, inside_outside=False):
    dims = [d_in_1 + d_in_2] + [d_hidden for _ in range(n_layers)] + [d_out]
    num_layers = len(dims)

    weights, biases = [], []
    for l in range(num_layers - 1):
        out_dim = dims[l + 1] - dims[0] if (l + 1) in skip_in else dims[l + 1]
        in_dim = dims[l]
        key, sub = jax.random.split(key)

        if l == num_layers - 2:
            mean = np.sqrt(np.pi) / np.sqrt(dims[l])
            if inside_outside:
                mean = -mean
            w = mean + 1e-4 * jax.random.normal(sub, (out_dim, in_dim),
                                                dtype=jnp.float32)
            b = jnp.full((out_dim,), (bias if inside_outside else -bias),
                         dtype=jnp.float32)
        else:
            std = np.sqrt(2.0) / np.sqrt(out_dim)
            w = std * jax.random.normal(sub, (out_dim, in_dim),
                                        dtype=jnp.float32)
            b = jnp.zeros((out_dim,), dtype=jnp.float32)

        weights.append(jnp.asarray(w, dtype=jnp.float32))
        biases.append(jnp.asarray(b, dtype=jnp.float32))
    return dims, weights, biases


# ----------------------------------------------------------------------------
# Softplus(beta=100, threshold=20) — matches torch.nn.Softplus.
# ----------------------------------------------------------------------------
def _softplus_beta(v, beta=100.0, threshold=20.0):
    t = v * beta
    e = jnp.exp(jnp.minimum(t, threshold))        # clamp: no inf in dead branch
    return jnp.where(t > threshold, v, jnp.log1p(e) * (1.0 / beta))


# ----------------------------------------------------------------------------
# Pallas kernel: whole MLP for one [*, TILE_N] column tile of points.
# ----------------------------------------------------------------------------
def _sdf_kernel(num_linears, skip_set, x_ref, *refs):
    # refs = (w0, w1, ..., bias_pack_ref, out_ref); skip layers have two
    # weight operands (W_x then W_in).
    out_ref = refs[-1]
    b_ref = refs[-2]
    w_refs = refs[:-2]

    inputs = x_ref[...]                            # [d0_pad, T]  (unscaled)
    x = inputs
    wi = 0
    for l in range(num_linears):
        if l in skip_set:
            w_x = w_refs[wi][...]
            w_in = w_refs[wi + 1][...]
            wi += 2
            y = (jnp.dot(w_x, x, preferred_element_type=jnp.float32)
                 + jnp.dot(w_in, inputs, preferred_element_type=jnp.float32))
        else:
            w = w_refs[wi][...]
            wi += 1
            y = jnp.dot(w, x, preferred_element_type=jnp.float32)
        out_dim = y.shape[0]
        y = y + b_ref[0:out_dim, l:l + 1]          # [out_dim,1] lane-broadcast
        if l < num_linears - 1:
            y = _softplus_beta(y)
        x = y
    out_ref[...] = x                               # [d_out_pad, T] aligned vst


# ----------------------------------------------------------------------------
# One-time parameter prep: fold scale / sqrt(2) / 1/scale, split skip weights,
# pad the input-feature and final-output axes to 8, pack biases.
# ----------------------------------------------------------------------------
def _prepare_kernel_params(weights, biases, *, d_in_1, skip_in, scale):
    nl = len(weights)
    d0 = int(weights[0].shape[1])
    d0_pad = _round_up(d0, 8)
    d_out = int(weights[-1].shape[0])
    d_out_pad = _round_up(d_out, 8)
    inv_sqrt2 = np.float32(1.0 / np.sqrt(2.0))

    # per-input-feature scale (folds `input_pts * scale`); padded features -> 0
    in_scale = np.zeros((d0_pad,), np.float32)
    in_scale[:d_in_1] = np.float32(scale)
    in_scale[d_in_1:d0] = 1.0

    max_out = max(d_out_pad, max(int(w.shape[0]) for w in weights))
    bpack = np.zeros((max_out, nl), np.float32)
    kernel_ws = []

    for l in range(nl):
        w = np.array(weights[l], dtype=np.float32)
        b = np.array(biases[l], dtype=np.float32)
        if l == nl - 1:                       # fold final `x[:, :1] / scale`
            w[0, :] *= np.float32(1.0 / scale)
            b[0] *= np.float32(1.0 / scale)
            # zero-pad output rows to a multiple of 8 -> aligned final store
            w_pad = np.zeros((d_out_pad, w.shape[1]), np.float32)
            w_pad[:d_out, :] = w
            w = w_pad
        if l in skip_in:
            n_x = w.shape[1] - d0             # columns acting on the hidden x
            w_x = w[:, :n_x] * inv_sqrt2
            w_in = np.zeros((w.shape[0], d0_pad), np.float32)
            w_in[:, :d0] = w[:, n_x:] * inv_sqrt2
            w_in *= in_scale[None, :]
            kernel_ws += [jnp.asarray(w_x), jnp.asarray(w_in)]
        elif l == 0:
            w0 = np.zeros((w.shape[0], d0_pad), np.float32)
            w0[:, :d0] = w
            w0 *= in_scale[None, :]
            kernel_ws.append(jnp.asarray(w0))
        else:
            kernel_ws.append(jnp.asarray(w))
        bpack[: b.shape[0], l] = b

    return kernel_ws, jnp.asarray(bpack), d0_pad, d0, d_out_pad, d_out


# ----------------------------------------------------------------------------
# Forward-pass factory.
# ----------------------------------------------------------------------------
def make_sdf_forward(weights, biases, *, d_in_1, skip_in=(2,), scale=1.0,
                     tile_n=2048):
    skip_in = tuple(int(s) for s in skip_in)
    kernel_ws, bpack, d0_pad, d0, d_out_pad, d_out = _prepare_kernel_params(
        weights, biases, d_in_1=d_in_1, skip_in=skip_in, scale=scale)
    num_linears = len(weights)
    assert tile_n % 128 == 0

    def forward(input_pts, topo_coord, alpha_ratio=None):
        del alpha_ratio  # unused for multires == 0
        n = input_pts.shape[0]
        # layout plumbing: one pass to present points with the batch axis on
        # lanes (no scale multiply here — folded into the weights).
        inputs_t = jnp.concatenate(
            [input_pts, topo_coord], axis=-1).astype(jnp.float32).T   # [d0, N]
        tn = tile_n if n > tile_n else _round_up(max(n, 1), 128)
        n_pad = _round_up(n, tn)
        inputs_t = jnp.pad(inputs_t, ((0, d0_pad - d0), (0, n_pad - n)))

        kernel = functools.partial(_sdf_kernel, num_linears,
                                   frozenset(skip_in))

        in_specs = [pl.BlockSpec((d0_pad, tn), lambda i: (0, i))]
        for w in kernel_ws:                       # resident, grid-invariant
            in_specs.append(pl.BlockSpec(w.shape, lambda i: (0, 0)))
        in_specs.append(pl.BlockSpec(bpack.shape, lambda i: (0, 0)))
        out_spec = pl.BlockSpec((d_out_pad, tn), lambda i: (0, i))

        out_t = pl.pallas_call(
            kernel,
            out_shape=jax.ShapeDtypeStruct((d_out_pad, n_pad), jnp.float32),
            grid_spec=pltpu.PrefetchScalarGridSpec(
                num_scalar_prefetch=0,
                grid=(n_pad // tn,),
                in_specs=in_specs,
                out_specs=out_spec,
            ),
            compiler_params=pltpu.CompilerParams(
                dimension_semantics=("parallel",)),
        )(inputs_t, *kernel_ws, bpack)

        return out_t[:d_out, :n].T                # back to [N, d_out]

    return jax.jit(forward)


# ----------------------------------------------------------------------------
# Pure-JAX reference (mirrors the torch module; uses the ORIGINAL params).
# ----------------------------------------------------------------------------
def sdf_forward_ref(input_pts, topo_coord, weights, biases, *,
                    skip_in=(2,), scale=1.0):
    inputs = jnp.concatenate([input_pts * scale, topo_coord], axis=-1)
    x = inputs
    nl = len(weights)
    for l in range(nl):
        if l in skip_in:
            x = jnp.concatenate([x, inputs], axis=1) / np.sqrt(2.0)
        x = jnp.matmul(x, weights[l].T,
                       precision=jax.lax.Precision.HIGHEST) + biases[l][None, :]
        if l < nl - 1:
            x = _softplus_beta(x)
    return jnp.concatenate([x[:, :1] / scale, x[:, 1:]], axis=-1)


# ----------------------------------------------------------------------------
if __name__ == "__main__":
    d_in_1, d_in_2, d_out = 3, 2, 5
    d_hidden, n_layers = 32, 4
    skip_in = (2,)
    scale = 1.5          # non-trivial scale exercises the static weight folds
    N = 200              # not tile-aligned -> exercises the padding path

    key = jax.random.PRNGKey(0)
    kp, kt, kw = jax.random.split(key, 3)
    input_pts = jax.random.normal(kp, (N, d_in_1), dtype=jnp.float32)
    topo_coord = jax.random.normal(kt, (N, d_in_2), dtype=jnp.float32)
    alpha_ratio = 1.0    # unused when multires == 0

    dims, weights, biases = build_sdf_params(
        kw, d_in_1, d_in_2, d_out, d_hidden, n_layers,
        skip_in=skip_in, bias=0.5, inside_outside=False)

    forward = make_sdf_forward(weights, biases, d_in_1=d_in_1,
                               skip_in=skip_in, scale=scale, tile_n=2048)
    out = jax.block_until_ready(forward(input_pts, topo_coord, alpha_ratio))

    ref = jax.block_until_ready(
        sdf_forward_ref(input_pts, topo_coord, weights, biases,
                        skip_in=skip_in, scale=scale))

    out_np, ref_np = np.asarray(out), np.asarray(ref)
    if out_np.shape != ref_np.shape:
        raise AssertionError(f"shape mismatch {out_np.shape} vs {ref_np.shape}")
    if not np.allclose(out_np, ref_np, rtol=1e-4, atol=1e-4):
        raise AssertionError(
            "Pallas output mismatch vs JAX reference (max abs err "
            f"{np.max(np.abs(out_np - ref_np))})")
    print("KERNEL_OK")
</pallas_src>

<mosaic_0001>
module attributes {stable_mosaic.version = 11 : i64} {
  func.func @_sdf_kernel(%arg0: i32, %arg1: memref<8x256xf32, #tpu.memory_space<vmem>>, %arg2: memref<32x8xf32, #tpu.memory_space<vmem>>, %arg3: memref<27x32xf32, #tpu.memory_space<vmem>>, %arg4: memref<32x27xf32, #tpu.memory_space<vmem>>, %arg5: memref<32x8xf32, #tpu.memory_space<vmem>>, %arg6: memref<32x32xf32, #tpu.memory_space<vmem>>, %arg7: memref<8x32xf32, #tpu.memory_space<vmem>>, %arg8: memref<32x5xf32, #tpu.memory_space<vmem>>, %arg9: memref<8x256xf32, #tpu.memory_space<vmem>>) attributes {dimension_semantics = [#tpu.dimension_semantics<parallel>], iteration_bounds = array<i64: 1>, scalar_prefetch = 0 : i64, scratch_operands = 0 : i64, tpu.core_type = #tpu.core_type<tc>, window_params = [{transform_indices = @transform_0, window_bounds = array<i64: 8, 256>}, {pipeline_mode = #tpu.pipeline_mode<synchronous>, transform_indices = @transform_1, window_bounds = array<i64: 32, 8>}, {pipeline_mode = #tpu.pipeline_mode<synchronous>, transform_indices = @transform_2, window_bounds = array<i64: 27, 32>}, {pipeline_mode = #tpu.pipeline_mode<synchronous>, transform_indices = @transform_3, window_bounds = array<i64: 32, 27>}, {pipeline_mode = #tpu.pipeline_mode<synchronous>, transform_indices = @transform_4, window_bounds = array<i64: 32, 8>}, {pipeline_mode = #tpu.pipeline_mode<synchronous>, transform_indices = @transform_5, window_bounds = array<i64: 32, 32>}, {pipeline_mode = #tpu.pipeline_mode<synchronous>, transform_indices = @transform_6, window_bounds = array<i64: 8, 32>}, {pipeline_mode = #tpu.pipeline_mode<synchronous>, transform_indices = @transform_7, window_bounds = array<i64: 32, 5>}, {transform_indices = @transform_8, window_bounds = array<i64: 8, 256>}]} {
    %c0 = arith.constant 0 : index
    %c0_0 = arith.constant 0 : index
    %0 = vector.load %arg1[%c0, %c0_0] : memref<8x256xf32, #tpu.memory_space<vmem>>, vector<8x256xf32>
    %c0_1 = arith.constant 0 : index
    %c0_2 = arith.constant 0 : index
    %1 = vector.load %arg2[%c0_1, %c0_2] : memref<32x8xf32, #tpu.memory_space<vmem>>, vector<32x8xf32>
    %cst = arith.constant dense<0.000000e+00> : vector<32x256xf32>
    %2 = tpu.matmul %1, %0, %cst {dimension_numbers = #tpu.dot_dimension_numbers<[1], [0], [0], [1], [0, 0, 1, 1], [], []>} : vector<32x8xf32>, vector<8x256xf32>, vector<32x256xf32> -> vector<32x256xf32>
    %c0_3 = arith.constant 0 : index
    %c0_4 = arith.constant 0 : index
    %3 = vector.load %arg8[%c0_3, %c0_4] : memref<32x5xf32, #tpu.memory_space<vmem>>, vector<32x1xf32>
    %4 = vector.broadcast %3 : vector<32x1xf32> to vector<32x256xf32>
    %5 = arith.addf %2, %4 : vector<32x256xf32>
    %cst_5 = arith.constant 1.000000e+02 : f32
    %6 = vector.broadcast %cst_5 : f32 to vector<32x256xf32>
    %7 = arith.mulf %5, %6 : vector<32x256xf32>
    %cst_6 = arith.constant 2.000000e+01 : f32
    %8 = vector.broadcast %cst_6 : f32 to vector<32x256xf32>
    %9 = arith.minimumf %7, %8 : vector<32x256xf32>
    %10 = math.exp %9 : vector<32x256xf32>
    %cst_7 = arith.constant 2.000000e+01 : f32
    %11 = vector.broadcast %cst_7 : f32 to vector<32x256xf32>
    %12 = arith.cmpf ogt, %7, %11 : vector<32x256xf32>
    %13 = math.log1p %10 : vector<32x256xf32>
    %cst_8 = arith.constant 0.00999999977 : f32
    %14 = vector.broadcast %cst_8 : f32 to vector<32x256xf32>
    %15 = arith.mulf %13, %14 : vector<32x256xf32>
    %16 = arith.select %12, %5, %15 : vector<32x256xi1>, vector<32x256xf32>
    %c0_9 = arith.constant 0 : index
    %c0_10 = arith.constant 0 : index
    %17 = vector.load %arg3[%c0_9, %c0_10] : memref<27x32xf32, #tpu.memory_space<vmem>>, vector<27x32xf32>
    %cst_11 = arith.constant dense<0.000000e+00> : vector<27x256xf32>
    %18 = tpu.matmul %17, %16, %cst_11 {dimension_numbers = #tpu.dot_dimension_numbers<[1], [0], [0], [1], [0, 0, 1, 1], [], []>} : vector<27x32xf32>, vector<32x256xf32>, vector<27x256xf32> -> vector<27x256xf32>
    %c0_12 = arith.constant 0 : index
    %c1 = arith.constant 1 : index
    %19 = vector.load %arg8[%c0_12, %c1] : memref<32x5xf32, #tpu.memory_space<vmem>>, vector<27x1xf32>
    %20 = vector.broadcast %19 : vector<27x1xf32> to vector<27x256xf32>
    %21 = arith.addf %18, %20 : vector<27x256xf32>
    %cst_13 = arith.constant 1.000000e+02 : f32
    %22 = vector.broadcast %cst_13 : f32 to vector<27x256xf32>
    %23 = arith.mulf %21, %22 : vector<27x256xf32>
    %cst_14 = arith.constant 2.000000e+01 : f32
    %24 = vector.broadcast %cst_14 : f32 to vector<27x256xf32>
    %25 = arith.minimumf %23, %24 : vector<27x256xf32>
    %26 = math.exp %25 : vector<27x256xf32>
    %cst_15 = arith.constant 2.000000e+01 : f32
    %27 = vector.broadcast %cst_15 : f32 to vector<27x256xf32>
    %28 = arith.cmpf ogt, %23, %27 : vector<27x256xf32>
    %29 = math.log1p %26 : vector<27x256xf32>
    %cst_16 = arith.constant 0.00999999977 : f32
    %30 = vector.broadcast %cst_16 : f32 to vector<27x256xf32>
    %31 = arith.mulf %29, %30 : vector<27x256xf32>
    %32 = arith.select %28, %21, %31 : vector<27x256xi1>, vector<27x256xf32>
    %c0_17 = arith.constant 0 : index
    %c0_18 = arith.constant 0 : index
    %33 = vector.load %arg4[%c0_17, %c0_18] : memref<32x27xf32, #tpu.memory_space<vmem>>, vector<32x27xf32>
    %c0_19 = arith.constant 0 : index
    %c0_20 = arith.constant 0 : index
    %34 = vector.load %arg5[%c0_19, %c0_20] : memref<32x8xf32, #tpu.memory_space<vmem>>, vector<32x8xf32>
    %cst_21 = arith.constant dense<0.000000e+00> : vector<32x256xf32>
    %35 = tpu.matmul %33, %32, %cst_21 {dimension_numbers = #tpu.dot_dimension_numbers<[1], [0], [0], [1], [0, 0, 1, 1], [], []>} : vector<32x27xf32>, vector<27x256xf32>, vector<32x256xf32> -> vector<32x256xf32>
    %cst_22 = arith.constant dense<0.000000e+00> : vector<32x256xf32>
    %36 = tpu.matmul %34, %0, %cst_22 {dimension_numbers = #tpu.dot_dimension_numbers<[1], [0], [0], [1], [0, 0, 1, 1], [], []>} : vector<32x8xf32>, vector<8x256xf32>, vector<32x256xf32> -> vector<32x256xf32>
    %37 = arith.addf %35, %36 : vector<32x256xf32>
    %c0_23 = arith.constant 0 : index
    %c2 = arith.constant 2 : index
    %38 = vector.load %arg8[%c0_23, %c2] : memref<32x5xf32, #tpu.memory_space<vmem>>, vector<32x1xf32>
    %39 = vector.broadcast %38 : vector<32x1xf32> to vector<32x256xf32>
    %40 = arith.addf %37, %39 : vector<32x256xf32>
    %cst_24 = arith.constant 1.000000e+02 : f32
    %41 = vector.broadcast %cst_24 : f32 to vector<32x256xf32>
    %42 = arith.mulf %40, %41 : vector<32x256xf32>
    %cst_25 = arith.constant 2.000000e+01 : f32
    %43 = vector.broadcast %cst_25 : f32 to vector<32x256xf32>
    %44 = arith.minimumf %42, %43 : vector<32x256xf32>
    %45 = math.exp %44 : vector<32x256xf32>
    %cst_26 = arith.constant 2.000000e+01 : f32
    %46 = vector.broadcast %cst_26 : f32 to vector<32x256xf32>
    %47 = arith.cmpf ogt, %42, %46 : vector<32x256xf32>
    %48 = math.log1p %45 : vector<32x256xf32>
    %cst_27 = arith.constant 0.00999999977 : f32
    %49 = vector.broadcast %cst_27 : f32 to vector<32x256xf32>
    %50 = arith.mulf %48, %49 : vector<32x256xf32>
    %51 = arith.select %47, %40, %50 : vector<32x256xi1>, vector<32x256xf32>
    %c0_28 = arith.constant 0 : index
    %c0_29 = arith.constant 0 : index
    %52 = vector.load %arg6[%c0_28, %c0_29] : memref<32x32xf32, #tpu.memory_space<vmem>>, vector<32x32xf32>
    %cst_30 = arith.constant dense<0.000000e+00> : vector<32x256xf32>
    %53 = tpu.matmul %52, %51, %cst_30 {dimension_numbers = #tpu.dot_dimension_numbers<[1], [0], [0], [1], [0, 0, 1, 1], [], []>} : vector<32x32xf32>, vector<32x256xf32>, vector<32x256xf32> -> vector<32x256xf32>
    %c0_31 = arith.constant 0 : index
    %c3 = arith.constant 3 : index
    %54 = vector.load %arg8[%c0_31, %c3] : memref<32x5xf32, #tpu.memory_space<vmem>>, vector<32x1xf32>
    %55 = vector.broadcast %54 : vector<32x1xf32> to vector<32x256xf32>
    %56 = arith.addf %53, %55 : vector<32x256xf32>
    %cst_32 = arith.constant 1.000000e+02 : f32
    %57 = vector.broadcast %cst_32 : f32 to vector<32x256xf32>
    %58 = arith.mulf %56, %57 : vector<32x256xf32>
    %cst_33 = arith.constant 2.000000e+01 : f32
    %59 = vector.broadcast %cst_33 : f32 to vector<32x256xf32>
    %60 = arith.minimumf %58, %59 : vector<32x256xf32>
    %61 = math.exp %60 : vector<32x256xf32>
    %cst_34 = arith.constant 2.000000e+01 : f32
    %62 = vector.broadcast %cst_34 : f32 to vector<32x256xf32>
    %63 = arith.cmpf ogt, %58, %62 : vector<32x256xf32>
    %64 = math.log1p %61 : vector<32x256xf32>
    %cst_35 = arith.constant 0.00999999977 : f32
    %65 = vector.broadcast %cst_35 : f32 to vector<32x256xf32>
    %66 = arith.mulf %64, %65 : vector<32x256xf32>
    %67 = arith.select %63, %56, %66 : vector<32x256xi1>, vector<32x256xf32>
    %c0_36 = arith.constant 0 : index
    %c0_37 = arith.constant 0 : index
    %68 = vector.load %arg7[%c0_36, %c0_37] : memref<8x32xf32, #tpu.memory_space<vmem>>, vector<8x32xf32>
    %cst_38 = arith.constant dense<0.000000e+00> : vector<8x256xf32>
    %69 = tpu.matmul %68, %67, %cst_38 {dimension_numbers = #tpu.dot_dimension_numbers<[1], [0], [0], [1], [0, 0, 1, 1], [], []>} : vector<8x32xf32>, vector<32x256xf32>, vector<8x256xf32> -> vector<8x256xf32>
    %c0_39 = arith.constant 0 : index
    %c4 = arith.constant 4 : index
    %70 = vector.load %arg8[%c0_39, %c4] : memref<32x5xf32, #tpu.memory_space<vmem>>, vector<8x1xf32>
    %71 = vector.broadcast %70 : vector<8x1xf32> to vector<8x256xf32>
    %72 = arith.addf %69, %71 : vector<8x256xf32>
    %c0_40 = arith.constant 0 : index
    %c0_41 = arith.constant 0 : index
    %73 = vector.load %arg9[%c0_40, %c0_41] : memref<8x256xf32, #tpu.memory_space<vmem>>, vector<8x256xf32>
    tpu.vector_store %arg9[%c0_40, %c0_41], %72 {strides = array<i32>} : memref<8x256xf32, #tpu.memory_space<vmem>>, vector<8x256xf32>,
    return
  }
  func.func @transform_0(%arg0: i32) -> (i32, i32) {
    %c0_i32 = arith.constant 0 : i32
    %c0_i32_0 = arith.constant 0 : i32
    return %c0_i32, %arg0 : i32, i32
  }
  func.func @transform_1(%arg0: i32) -> (i32, i32) {
    %c0_i32 = arith.constant 0 : i32
    %c0_i32_0 = arith.constant 0 : i32
    %c0_i32_1 = arith.constant 0 : i32
    return %c0_i32, %c0_i32_0 : i32, i32
  }
  func.func @transform_2(%arg0: i32) -> (i32, i32) {
    %c0_i32 = arith.constant 0 : i32
    %c0_i32_0 = arith.constant 0 : i32
    %c0_i32_1 = arith.constant 0 : i32
    return %c0_i32, %c0_i32_0 : i32, i32
  }
  func.func @transform_3(%arg0: i32) -> (i32, i32) {
    %c0_i32 = arith.constant 0 : i32
    %c0_i32_0 = arith.constant 0 : i32
    %c0_i32_1 = arith.constant 0 : i32
    return %c0_i32, %c0_i32_0 : i32, i32
  }
  func.func @transform_4(%arg0: i32) -> (i32, i32) {
    %c0_i32 = arith.constant 0 : i32
    %c0_i32_0 = arith.constant 0 : i32
    %c0_i32_1 = arith.constant 0 : i32
    return %c0_i32, %c0_i32_0 : i32, i32
  }
  func.func @transform_5(%arg0: i32) -> (i32, i32) {
    %c0_i32 = arith.constant 0 : i32
    %c0_i32_0 = arith.constant 0 : i32
    %c0_i32_1 = arith.constant 0 : i32
    return %c0_i32, %c0_i32_0 : i32, i32
  }
  func.func @transform_6(%arg0: i32) -> (i32, i32) {
    %c0_i32 = arith.constant 0 : i32
    %c0_i32_0 = arith.constant 0 : i32
    %c0_i32_1 = arith.constant 0 : i32
    return %c0_i32, %c0_i32_0 : i32, i32
  }
  func.func @transform_7(%arg0: i32) -> (i32, i32) {
    %c0_i32 = arith.constant 0 : i32
    %c0_i32_0 = arith.constant 0 : i32
    %c0_i32_1 = arith.constant 0 : i32
    return %c0_i32, %c0_i32_0 : i32, i32
  }
  func.func @transform_8(%arg0: i32) -> (i32, i32) {
    %c0_i32 = arith.constant 0 : i32
    %c0_i32_0 = arith.constant 0 : i32
    return %c0_i32, %arg0 : i32, i32
  }
}

</mosaic_0001>

<llo_original>
// kernel: forward.1
$region0: #{forward.1}
  #allocation0 [shape = 'u32[]', space=smem, size = 0x4, offset = 0x4, fixed_abs, tag = 'smem constant byte address 0x4 - core index']
  #allocation1 [shape = 'u32[144,128]{1,0:T(1,128)}', space=vmem, size = 0x12000, scoped, tag = 'internal scratch']
  %s0 = inlined_call_operand.vmem [shape: f32[8,256], index: 0, kind: input, shape index: {}]
  %s1 = inlined_call_operand.hbm [shape: f32[32,8], index: 1, kind: input, shape index: {}]
  %s2 = inlined_call_operand.hbm [shape: f32[27,32], index: 2, kind: input, shape index: {}]
  %s3 = inlined_call_operand.hbm [shape: f32[32,27], index: 3, kind: input, shape index: {}]
  %s4 = inlined_call_operand.hbm [shape: f32[32,8], index: 4, kind: input, shape index: {}]
  %s5 = inlined_call_operand.vmem [shape: f32[32,32], index: 5, kind: input, shape index: {}]
  %s6 = inlined_call_operand.vmem [shape: f32[8,32], index: 6, kind: input, shape index: {}]
  %s7 = inlined_call_operand.vmem [shape: f32[32,5], index: 7, kind: input, shape index: {}]
  %s8 = inlined_call_operand.vmem [shape: f32[8,256], index: 8, kind: output, shape index: {}]
  %s9 = sld [smem:[#allocation0]]
  $region58: #{forward.1} parent=0
    _
  %s11 = ssub.s32 1, %s9
  %s12 = scalar_select 0, %s11, %s9
  $region1: #{forward.1} parent=0
    #allocation2 [shape = 'u8[16384]{0}', space=vmem, size = 0x4000, scoped, tag = 'input window, operand 1, single buffered']
    #allocation3 [shape = 's32[1]{0}', space=sflag, size = 0x4, scoped, tag = 'scoped memory for forward.1']
    #allocation4 [shape = 'u8[16384]{0}', space=vmem, size = 0x4000, scoped, tag = 'input window, operand 2, single buffered']
    #allocation5 [shape = 's32[1]{0}', space=sflag, size = 0x4, scoped, tag = 'scoped memory for forward.1']
    #allocation6 [shape = 'u8[16384]{0}', space=vmem, size = 0x4000, scoped, tag = 'input window, operand 3, single buffered']
    #allocation7 [shape = 'u8[16384]{0}', space=vmem, size = 0x4000, scoped, tag = 'input window, operand 4, single buffered']
    #allocation8 [shape = 's32[1]{0}', space=sflag, size = 0x4, scoped, tag = 'scoped memory for forward.1']
    %13 = vsyncpa [#allocation3], 0
    %14 = vsyncpa [#allocation5], 0
    %15 = vsyncpa [#allocation8], 0
    // Predicated region
    $region2: #{forward.1} parent=1 // pred_check
      _
    $region3: #{forward.1} parent=1 // pred_check_branch
      %17 = sbr.rel (0) target = $region5
    $region4: #{forward.1} parent=1 // pred_region
      _
    $region5: #{forward.1} parent=1 // pred_fallthru
      _
    // Predicated region
    $region6: #{forward.1} parent=1 // pred_check
      _
    $region7: #{forward.1} parent=1 // pred_check_branch
      %19 = sbr.rel (0) target = $region9
    $region8: #{forward.1} parent=1 // pred_region
      %s21 = ssub.s32 512, 512
      %22 = vsyncadd [#allocation3], %s21
      %s23 = sshll.u32 [#allocation2], 4
      %s24 = int_to_ptr.vmem [resolvable:$true] %s23
      %29 = dma.hbm_to_vmem [thread:$0]  %s1, 512, %s24, [#allocation3], 128, 128, 8
    $region9: #{forward.1} parent=1 // pred_fallthru
      _
    // Predicated region
    $region10: #{forward.1} parent=1 // pred_check
      _
    $region11: #{forward.1} parent=1 // pred_check_branch
      %31 = sbr.rel (0) target = $region13
    $region12: #{forward.1} parent=1 // pred_region
      %s33 = ssub.s32 512, 512
      %34 = vsyncadd [#allocation5], %s33
      %s35 = sshll.u32 [#allocation4], 4
      %s36 = int_to_ptr.vmem [resolvable:$true] %s35
      %41 = dma.hbm_to_vmem [thread:$0]  %s2, 512, %s36, [#allocation5], 128, 128, 8
    $region13: #{forward.1} parent=1 // pred_fallthru
      _
    // Predicated region
    $region14: #{forward.1} parent=1 // pred_check
      _
    $region15: #{forward.1} parent=1 // pred_check_branch
      %43 = sbr.rel (0) target = $region17
    $region16: #{forward.1} parent=1 // pred_region
      %s45 = ssub.s32 512, 512
      %46 = vsyncadd [#allocation5], %s45
      %s47 = sshll.u32 [#allocation6], 4
      %s48 = int_to_ptr.vmem [resolvable:$true] %s47
      %53 = dma.hbm_to_vmem [thread:$0]  %s3, 512, %s48, [#allocation5], 128, 128, 8
    $region17: #{forward.1} parent=1 // pred_fallthru
      _
    // Predicated region
    $region18: #{forward.1} parent=1 // pred_check
      _
    $region19: #{forward.1} parent=1 // pred_check_branch
      %55 = sbr.rel (0) target = $region21
    $region20: #{forward.1} parent=1 // pred_region
      %s57 = ssub.s32 512, 512
      %58 = vsyncadd [#allocation8], %s57
      %s59 = sshll.u32 [#allocation7], 4
      %s60 = int_to_ptr.vmem [resolvable:$true] %s59
      %65 = dma.hbm_to_vmem [thread:$0]  %s4, 512, %s60, [#allocation8], 128, 128, 8
    $region21: #{forward.1} parent=1 // pred_fallthru
      _
    // Predicated region
    $region22: #{forward.1} parent=1 // pred_check
      _
    $region23: #{forward.1} parent=1 // pred_check_branch
      %67 = sbr.rel (0) target = $region25
    $region24: #{forward.1} parent=1 // pred_region
      _
    $region25: #{forward.1} parent=1 // pred_fallthru
      _
    // Predicated region
    $region26: #{forward.1} parent=1 // pred_check
      _
    $region27: #{forward.1} parent=1 // pred_check_branch
      %69 = sbr.rel (0) target = $region29
    $region28: #{forward.1} parent=1 // pred_region
      _
    $region29: #{forward.1} parent=1 // pred_fallthru
      _
    // Predicated region
    $region30: #{forward.1} parent=1 // pred_check
      _
    $region31: #{forward.1} parent=1 // pred_check_branch
      %71 = sbr.rel (0) target = $region33
    $region32: #{forward.1} parent=1 // pred_region
      _
    $region33: #{forward.1} parent=1 // pred_fallthru
      _
    // Predicated region
    $region34: #{forward.1} parent=1 // pred_check
      _
    $region35: #{forward.1} parent=1 // pred_check_branch
      %73 = sbr.rel (0) target = $region37
    $region36: #{forward.1} parent=1 // pred_region
      %74 = dma.done [#allocation3], 512
    $region37: #{forward.1} parent=1 // pred_fallthru
      _
    // Predicated region
    $region38: #{forward.1} parent=1 // pred_check
      _
    $region39: #{forward.1} parent=1 // pred_check_branch
      %76 = sbr.rel (0) target = $region41
    $region40: #{forward.1} parent=1 // pred_region
      %77 = dma.done [#allocation5], 512
    $region41: #{forward.1} parent=1 // pred_fallthru
      _
    // Predicated region
    $region42: #{forward.1} parent=1 // pred_check
      _
    $region43: #{forward.1} parent=1 // pred_check_branch
      %79 = sbr.rel (0) target = $region45
    $region44: #{forward.1} parent=1 // pred_region
      %80 = dma.done [#allocation5], 512
    $region45: #{forward.1} parent=1 // pred_fallthru
      _
    // Predicated region
    $region46: #{forward.1} parent=1 // pred_check
      _
    $region47: #{forward.1} parent=1 // pred_check_branch
      %82 = sbr.rel (0) target = $region49
    $region48: #{forward.1} parent=1 // pred_region
      %83 = dma.done [#allocation8], 512
    $region49: #{forward.1} parent=1 // pred_fallthru
      _
    %v84 = vld [vmem:[%s0] sm:$0xff]
    %v85 = vld [vmem:[%s0 + $0x8] sm:$0xff]
    %v86 = vld [vmem:[#allocation2] sm:$0xff]
    %v87 = vld [vmem:[#allocation2 + $0x8] sm:$0xff]
    %v88 = vld [vmem:[#allocation2 + $0x10] sm:$0xff]
    %v89 = vld [vmem:[#allocation2 + $0x18] sm:$0xff]
    %v90 = vld [vmem:[%s7] sm:$0xff]
    %v91 = vld [vmem:[%s7 + $0x8] sm:$0xff]
    %v92 = vld [vmem:[%s7 + $0x10] sm:$0xff]
    %v93 = vld [vmem:[%s7 + $0x18] sm:$0xff]
    %95 = vset.pattern.permute.xlu0 0
    %96 = vperm.xlu0 %95, %v90
    %v97 = vpop.permute.xlu0 %96
    %100 = vset.pattern.permute.xlu0 0
    %101 = vperm.xlu0 %100, %v91
    %v102 = vpop.permute.xlu0 %101
    %105 = vset.pattern.permute.xlu0 0
    %106 = vperm.xlu0 %105, %v92
    %v107 = vpop.permute.xlu0 %106
    %110 = vset.pattern.permute.xlu0 0
    %111 = vperm.xlu0 %110, %v93
    %v112 = vpop.permute.xlu0 %111
    %vm114 = vcmask 64512
    %v116 = vsel %vm114, %v86, 0
    %v119 = vsel %vm114, %v87, 0
    %v122 = vsel %vm114, %v88, 0
    %v125 = vsel %vm114, %v89, 0
    %127 = vmatprep.subr.mxu0 %v85
    %128 = vmatpush1.msra.mxu0 %v84
    %129 = vmatprep.subr.mxu0 0.0
    %130 = vmatpush1.msra.mxu0 0.0
    %131 = vmatprep.subr.mxu0 0.0
    %132 = vmatpush1.msra.mxu0 0.0
    %133 = vmatprep.subr.mxu0 0.0
    %134 = vmatpush1.msra.mxu0 0.0
    %135 = vmatprep.subr.mxu0 0.0
    %136 = vmatpush1.msra.mxu0 0.0
    %137 = vmatprep.subr.mxu0 0.0
    %138 = vmatpush1.msra.mxu0 0.0
    %139 = vmatprep.subr.mxu0 0.0
    %140 = vmatpush1.msra.mxu0 0.0
    %141 = vmatprep.subr.mxu0 0.0
    %142 = vmatpush1.msra.mxu0 0.0
    %143 = vmatprep.subr.mxu0 0.0
    %144 = vmatpush1.msra.mxu0 0.0
    %145 = vmatprep.subr.mxu0 0.0
    %146 = vmatpush1.msra.mxu0 0.0
    %147 = vmatprep.subr.mxu0 0.0
    %148 = vmatpush1.msra.mxu0 0.0
    %149 = vmatprep.subr.mxu0 0.0
    %150 = vmatpush1.msra.mxu0 0.0
    %151 = vmatprep.subr.mxu0 0.0
    %152 = vmatpush1.msra.mxu0 0.0
    %153 = vmatprep.subr.mxu0 0.0
    %154 = vmatpush1.msra.mxu0 0.0
    %155 = vmatprep.subr.mxu0 0.0
    %156 = vmatpush1.msra.mxu0 0.0
    %157 = vmatprep.subr.mxu0 0.0
    %158 = vmatpush1.msra.mxu0 0.0
    %159 = vmatprep.subr.mxu0 0.0
    %160 = vmatpush1.msra.mxu0 0.0
    %161 = vmatprep.subr.mxu0 0.0
    %162 = vmatpush1.msra.mxu0 0.0
    %163 = vmatprep.subr.mxu0 0.0
    %164 = vmatpush1.msra.mxu0 0.0
    %165 = vmatprep.subr.mxu0 0.0
    %166 = vmatpush1.msra.mxu0 0.0
    %167 = vmatprep.subr.mxu0 0.0
    %168 = vmatpush1.msra.mxu0 0.0
    %169 = vmatprep.subr.mxu0 0.0
    %170 = vmatpush1.msra.mxu0 0.0
    %171 = vmatprep.subr.mxu0 0.0
    %172 = vmatpush1.msra.mxu0 0.0
    %173 = vmatprep.subr.mxu0 0.0
    %174 = vmatpush1.msra.mxu0 0.0
    %175 = vmatprep.subr.mxu0 0.0
    %176 = vmatpush1.msra.mxu0 0.0
    %177 = vmatprep.subr.mxu0 0.0
    %178 = vmatpush1.msra.mxu0 0.0
    %179 = vmatprep.subr.mxu0 0.0
    %180 = vmatpush1.msra.mxu0 0.0
    %181 = vmatprep.subr.mxu0 0.0
    %182 = vmatpush1.msra.mxu0 0.0
    %183 = vmatprep.subr.mxu0 0.0
    %184 = vmatpush1.msra.mxu0 0.0
    %185 = vmatprep.subr.mxu0 0.0
    %186 = vmatpush1.msra.mxu0 0.0
    %187 = vmatprep.subr.mxu0 0.0
    %188 = vmatpush1.msra.mxu0 0.0
    %189 = vmatprep.subr.mxu0 0.0
    %190 = vmatpush1.msra.mxu0 0.0
    %191 = vmatprep.mubr.f32.mxu0 0.0
    %192 = vmatmul.mubr.f32.gmra.mrb[0].mxu0 %v116
    %v193 = vpop.f32.mrb[0].mxu0
    %v194 = vadd.f32 %v97, %v193
    %v195 = vpop.f32.mrb[0].mxu0
    %v196 = vadd.f32 %v97, %v195
    %197 = vmatprep.mubr.f32.mxu0 0.0
    %198 = vmatmul.mubr.f32.gmra.mrb[0].mxu0 %v119
    %v199 = vpop.f32.mrb[0].mxu0
    %v200 = vadd.f32 %v102, %v199
    %v201 = vpop.f32.mrb[0].mxu0
    %v202 = vadd.f32 %v102, %v201
    %203 = vmatprep.mubr.f32.mxu0 0.0
    %204 = vmatmul.mubr.f32.gmra.mrb[0].mxu0 %v122
    %v205 = vpop.f32.mrb[0].mxu0
    %v206 = vadd.f32 %v107, %v205
    %v207 = vpop.f32.mrb[0].mxu0
    %v208 = vadd.f32 %v107, %v207
    %209 = vmatprep.mubr.f32.mxu0 0.0
    %210 = vmatmul.mubr.f32.gmra.mrb[0].mxu0 %v125
    %v211 = vpop.f32.mrb[0].mxu0
    %v212 = vadd.f32 %v112, %v211
    %v213 = vpop.f32.mrb[0].mxu0
    %v214 = vadd.f32 %v112, %v213
    %215 = vdwg.mxu0
    %v216 = vmul.f32 %v194, 100.0
    %v217 = vmul.f32 %v196, 100.0
    %v218 = vmul.f32 %v200, 100.0
    %v219 = vmul.f32 %v202, 100.0
    %v220 = vmul.f32 %v206, 100.0
    %v221 = vmul.f32 %v208, 100.0
    %v222 = vmul.f32 %v212, 100.0
    %v223 = vmul.f32 %v214, 100.0
    %v224 = vmin.f32 %v216, 20.0
    %v225 = vmin.f32 %v217, 20.0
    %v226 = vmin.f32 %v218, 20.0
    %v227 = vmin.f32 %v219, 20.0
    %v228 = vmin.f32 %v220, 20.0
    %v229 = vmin.f32 %v221, 20.0
    %v230 = vmin.f32 %v222, 20.0
    %v231 = vmin.f32 %v223, 20.0
    %v232 = vmul.f32 %v224, 1.442695
    %v233 = vpow.pop %v232
    %v234 = vmul.f32 %v225, 1.442695
    %v235 = vpow.pop %v234
    %v236 = vmul.f32 %v226, 1.442695
    %v237 = vpow.pop %v236
    %v238 = vmul.f32 %v227, 1.442695
    %v239 = vpow.pop %v238
    %v240 = vmul.f32 %v228, 1.442695
    %v241 = vpow.pop %v240
    %v242 = vmul.f32 %v229, 1.442695
    %v243 = vpow.pop %v242
    %v244 = vmul.f32 %v230, 1.442695
    %v245 = vpow.pop %v244
    %v246 = vmul.f32 %v231, 1.442695
    %v247 = vpow.pop %v246
    %vm248 = vcmp.gt.f32.partialorder %v216, 20.0
    %vm249 = vcmp.gt.f32.partialorder %v217, 20.0
    %vm250 = vcmp.gt.f32.partialorder %v218, 20.0
    %vm251 = vcmp.gt.f32.partialorder %v219, 20.0
    %vm252 = vcmp.gt.f32.partialorder %v220, 20.0
    %vm253 = vcmp.gt.f32.partialorder %v221, 20.0
    %vm254 = vcmp.gt.f32.partialorder %v222, 20.0
    %vm255 = vcmp.gt.f32.partialorder %v223, 20.0
    %v256 = vadd.f32 %v233, 1.0
    %v257 = vlog2.pop %v256
    %v258 = vmul.f32 %v257, 0.6931472
    %v259 = vmul.f32 -0.5, %v233
    %v260 = vadd.f32 %v259, 1.0
    %v261 = vmul.f32 %v260, %v233
    %v262 = vand.u32 2147483647, %v233
    %vm263 = vcmp.lt.f32.partialorder %v262, 0.0004427343
    %v264 = vsel %vm263, %v261, %v258
    %v265 = vadd.f32 %v235, 1.0
    %v266 = vlog2.pop %v265
    %v267 = vmul.f32 %v266, 0.6931472
    %v268 = vmul.f32 -0.5, %v235
    %v269 = vadd.f32 %v268, 1.0
    %v270 = vmul.f32 %v269, %v235
    %v271 = vand.u32 2147483647, %v235
    %vm272 = vcmp.lt.f32.partialorder %v271, 0.0004427343
    %v273 = vsel %vm272, %v270, %v267
    %v274 = vadd.f32 %v237, 1.0
    %v275 = vlog2.pop %v274
    %v276 = vmul.f32 %v275, 0.6931472
    %v277 = vmul.f32 -0.5, %v237
    %v278 = vadd.f32 %v277, 1.0
    %v279 = vmul.f32 %v278, %v237
    %v280 = vand.u32 2147483647, %v237
    %vm281 = vcmp.lt.f32.partialorder %v280, 0.0004427343
    %v282 = vsel %vm281, %v279, %v276
    %v283 = vadd.f32 %v239, 1.0
    %v284 = vlog2.pop %v283
    %v285 = vmul.f32 %v284, 0.6931472
    %v286 = vmul.f32 -0.5, %v239
    %v287 = vadd.f32 %v286, 1.0
    %v288 = vmul.f32 %v287, %v239
    %v289 = vand.u32 2147483647, %v239
    %vm290 = vcmp.lt.f32.partialorder %v289, 0.0004427343
    %v291 = vsel %vm290, %v288, %v285
    %v292 = vadd.f32 %v241, 1.0
    %v293 = vlog2.pop %v292
    %v294 = vmul.f32 %v293, 0.6931472
    %v295 = vmul.f32 -0.5, %v241
    %v296 = vadd.f32 %v295, 1.0
    %v297 = vmul.f32 %v296, %v241
    %v298 = vand.u32 2147483647, %v241
    %vm299 = vcmp.lt.f32.partialorder %v298, 0.0004427343
    %v300 = vsel %vm299, %v297, %v294
    %v301 = vadd.f32 %v243, 1.0
    %v302 = vlog2.pop %v301
    %v303 = vmul.f32 %v302, 0.6931472
    %v304 = vmul.f32 -0.5, %v243
    %v305 = vadd.f32 %v304, 1.0
    %v306 = vmul.f32 %v305, %v243
    %v307 = vand.u32 2147483647, %v243
    %vm308 = vcmp.lt.f32.partialorder %v307, 0.0004427343
    %v309 = vsel %vm308, %v306, %v303
    %v310 = vadd.f32 %v245, 1.0
    %v311 = vlog2.pop %v310
    %v312 = vmul.f32 %v311, 0.6931472
    %v313 = vmul.f32 -0.5, %v245
    %v314 = vadd.f32 %v313, 1.0
    %v315 = vmul.f32 %v314, %v245
    %v316 = vand.u32 2147483647, %v245
    %vm317 = vcmp.lt.f32.partialorder %v316, 0.0004427343
    %v318 = vsel %vm317, %v315, %v312
    %v319 = vadd.f32 %v247, 1.0
    %v320 = vlog2.pop %v319
    %v321 = vmul.f32 %v320, 0.6931472
    %v322 = vmul.f32 -0.5, %v247
    %v323 = vadd.f32 %v322, 1.0
    %v324 = vmul.f32 %v323, %v247
    %v325 = vand.u32 2147483647, %v247
    %vm326 = vcmp.lt.f32.partialorder %v325, 0.0004427343
    %v327 = vsel %vm326, %v324, %v321
    %v328 = vmul.f32 %v264, 0.01
    %v329 = vmul.f32 %v273, 0.01
    %v330 = vmul.f32 %v282, 0.01
    %v331 = vmul.f32 %v291, 0.01
    %v332 = vmul.f32 %v300, 0.01
    %v333 = vmul.f32 %v309, 0.01
    %v334 = vmul.f32 %v318, 0.01
    %v335 = vmul.f32 %v327, 0.01
    %v336 = vsel %vm248, %v194, %v328
    %v337 = vsel %vm249, %v196, %v329
    %v338 = vsel %vm250, %v200, %v330
    %v339 = vsel %vm251, %v202, %v331
    %v340 = vsel %vm252, %v206, %v332
    %v341 = vsel %vm253, %v208, %v333
    %v342 = vsel %vm254, %v212, %v334
    %v343 = vsel %vm255, %v214, %v335
    %v344 = vld [vmem:[#allocation4] sm:$0xff]
    %v345 = vld [vmem:[#allocation4 + $0x8] sm:$0xff]
    %v346 = vld [vmem:[#allocation4 + $0x10] sm:$0xff]
    %v347 = vld [vmem:[#allocation4 + $0x18] sm:$0x7]
    %v348 = vld [vmem:[%s7] sm:$0xff]
    %v349 = vld [vmem:[%s7 + $0x8] sm:$0xff]
    %v350 = vld [vmem:[%s7 + $0x10] sm:$0xff]
    %v351 = vld [vmem:[%s7 + $0x18] sm:$0x7]
    %353 = vset.pattern.permute.xlu0 1
    %354 = vperm.xlu0 %353, %v348
    %v355 = vpop.permute.xlu0 %354
    %358 = vset.pattern.permute.xlu0 1
    %359 = vperm.xlu0 %358, %v349
    %v360 = vpop.permute.xlu0 %359
    %363 = vset.pattern.permute.xlu0 1
    %364 = vperm.xlu0 %363, %v350
    %v365 = vpop.permute.xlu0 %364
    %368 = vset.pattern.permute.xlu0 1
    %369 = vperm.xlu0 %368, %v351
    %v370 = vpop.permute.xlu0 %369
    %vm372 = vcmask 261120
    %v374 = vsel %vm372, %v344, 0
    %v377 = vsel %vm372, %v345, 0
    %v380 = vsel %vm372, %v346, 0
    %v383 = vsel %vm372, %v347, 0
    %385 = vmatprep.subr.mxu0 %v337
    %386 = vmatpush1.msra.mxu0 %v336
    %387 = vmatprep.subr.mxu0 %v339
    %388 = vmatpush1.msra.mxu0 %v338
    %389 = vmatprep.subr.mxu0 %v341
    %390 = vmatpush1.msra.mxu0 %v340
    %391 = vmatprep.subr.mxu0 %v343
    %392 = vmatpush1.msra.mxu0 %v342
    %393 = vmatprep.subr.mxu0 0.0
    %394 = vmatpush1.msra.mxu0 0.0
    %395 = vmatprep.subr.mxu0 0.0
    %396 = vmatpush1.msra.mxu0 0.0
    %397 = vmatprep.subr.mxu0 0.0
    %398 = vmatpush1.msra.mxu0 0.0
    %399 = vmatprep.subr.mxu0 0.0
    %400 = vmatpush1.msra.mxu0 0.0
    %401 = vmatprep.subr.mxu0 0.0
    %402 = vmatpush1.msra.mxu0 0.0
    %403 = vmatprep.subr.mxu0 0.0
    %404 = vmatpush1.msra.mxu0 0.0
    %405 = vmatprep.subr.mxu0 0.0
    %406 = vmatpush1.msra.mxu0 0.0
    %407 = vmatprep.subr.mxu0 0.0
    %408 = vmatpush1.msra.mxu0 0.0
    %409 = vmatprep.subr.mxu0 0.0
    %410 = vmatpush1.msra.mxu0 0.0
    %411 = vmatprep.subr.mxu0 0.0
    %412 = vmatpush1.msra.mxu0 0.0
    %413 = vmatprep.subr.mxu0 0.0
    %414 = vmatpush1.msra.mxu0 0.0
    %415 = vmatprep.subr.mxu0 0.0
    %416 = vmatpush1.msra.mxu0 0.0
    %417 = vmatprep.subr.mxu0 0.0
    %418 = vmatpush1.msra.mxu0 0.0
    %419 = vmatprep.subr.mxu0 0.0
    %420 = vmatpush1.msra.mxu0 0.0
    %421 = vmatprep.subr.mxu0 0.0
    %422 = vmatpush1.msra.mxu0 0.0
    %423 = vmatprep.subr.mxu0 0.0
    %424 = vmatpush1.msra.mxu0 0.0
    %425 = vmatprep.subr.mxu0 0.0
    %426 = vmatpush1.msra.mxu0 0.0
    %427 = vmatprep.subr.mxu0 0.0
    %428 = vmatpush1.msra.mxu0 0.0
    %429 = vmatprep.subr.mxu0 0.0
    %430 = vmatpush1.msra.mxu0 0.0
    %431 = vmatprep.subr.mxu0 0.0
    %432 = vmatpush1.msra.mxu0 0.0
    %433 = vmatprep.subr.mxu0 0.0
    %434 = vmatpush1.msra.mxu0 0.0
    %435 = vmatprep.subr.mxu0 0.0
    %436 = vmatpush1.msra.mxu0 0.0
    %437 = vmatprep.subr.mxu0 0.0
    %438 = vmatpush1.msra.mxu0 0.0
    %439 = vmatprep.subr.mxu0 0.0
    %440 = vmatpush1.msra.mxu0 0.0
    %441 = vmatprep.subr.mxu0 0.0
    %442 = vmatpush1.msra.mxu0 0.0
    %443 = vmatprep.subr.mxu0 0.0
    %444 = vmatpush1.msra.mxu0 0.0
    %445 = vmatprep.subr.mxu0 0.0
    %446 = vmatpush1.msra.mxu0 0.0
    %447 = vmatprep.subr.mxu0 0.0
    %448 = vmatpush1.msra.mxu0 0.0
    %449 = vmatprep.mubr.f32.mxu0 0.0
    %450 = vmatmul.mubr.f32.gmra.mrb[0].mxu0 %v374
    %v451 = vpop.f32.mrb[0].mxu0
    %v452 = vadd.f32 %v355, %v451
    %v453 = vpop.f32.mrb[0].mxu0
    %v454 = vadd.f32 %v355, %v453
    %455 = vmatprep.mubr.f32.mxu0 0.0
    %456 = vmatmul.mubr.f32.gmra.mrb[0].mxu0 %v377
    %v457 = vpop.f32.mrb[0].mxu0
    %v458 = vadd.f32 %v360, %v457
    %v459 = vpop.f32.mrb[0].mxu0
    %v460 = vadd.f32 %v360, %v459
    %461 = vmatprep.mubr.f32.mxu0 0.0
    %462 = vmatmul.mubr.f32.gmra.mrb[0].mxu0 %v380
    %v463 = vpop.f32.mrb[0].mxu0
    %v464 = vadd.f32 %v365, %v463
    %v465 = vpop.f32.mrb[0].mxu0
    %v466 = vadd.f32 %v365, %v465
    %467 = vmatprep.mubr.f32.mxu0 0.0
    %468 = vmatmul.mubr.f32.gmra.mrb[0].mxu0 %v383
    %v469 = vpop.f32.mrb[0].mxu0
    %v470 = vadd.f32 %v370, %v469
    %v471 = vpop.f32.mrb[0].mxu0
    %v472 = vadd.f32 %v370, %v471
    %473 = vdwg.mxu0
    %v474 = vmul.f32 %v452, 100.0
    %v475 = vmul.f32 %v454, 100.0
    %v476 = vmul.f32 %v458, 100.0
    %v477 = vmul.f32 %v460, 100.0
    %v478 = vmul.f32 %v464, 100.0
    %v479 = vmul.f32 %v466, 100.0
    %v480 = vmul.f32 %v470, 100.0
    %v481 = vmul.f32 %v472, 100.0
    %v482 = vmin.f32 %v474, 20.0
    %v483 = vmin.f32 %v475, 20.0
    %v484 = vmin.f32 %v476, 20.0
    %v485 = vmin.f32 %v477, 20.0
    %v486 = vmin.f32 %v478, 20.0
    %v487 = vmin.f32 %v479, 20.0
    %v488 = vmin.f32 %v480, 20.0
    %v489 = vmin.f32 %v481, 20.0
    %v490 = vmul.f32 %v482, 1.442695
    %v491 = vpow.pop %v490
    %v492 = vmul.f32 %v483, 1.442695
    %v493 = vpow.pop %v492
    %v494 = vmul.f32 %v484, 1.442695
    %v495 = vpow.pop %v494
    %v496 = vmul.f32 %v485, 1.442695
    %v497 = vpow.pop %v496
    %v498 = vmul.f32 %v486, 1.442695
    %v499 = vpow.pop %v498
    %v500 = vmul.f32 %v487, 1.442695
    %v501 = vpow.pop %v500
    %v502 = vmul.f32 %v488, 1.442695
    %v503 = vpow.pop %v502
    %v504 = vmul.f32 %v489, 1.442695
    %v505 = vpow.pop %v504
    %vm506 = vcmp.gt.f32.partialorder %v474, 20.0
    %vm507 = vcmp.gt.f32.partialorder %v475, 20.0
    %vm508 = vcmp.gt.f32.partialorder %v476, 20.0
    %vm509 = vcmp.gt.f32.partialorder %v477, 20.0
    %vm510 = vcmp.gt.f32.partialorder %v478, 20.0
    %vm511 = vcmp.gt.f32.partialorder %v479, 20.0
    %vm512 = vcmp.gt.f32.partialorder %v480, 20.0
    %vm513 = vcmp.gt.f32.partialorder %v481, 20.0
    %v514 = vadd.f32 %v491, 1.0
    %v515 = vlog2.pop %v514
    %v516 = vmul.f32 %v515, 0.6931472
    %v517 = vmul.f32 -0.5, %v491
    %v518 = vadd.f32 %v517, 1.0
    %v519 = vmul.f32 %v518, %v491
    %v520 = vand.u32 2147483647, %v491
    %vm521 = vcmp.lt.f32.partialorder %v520, 0.0004427343
    %v522 = vsel %vm521, %v519, %v516
    %v523 = vadd.f32 %v493, 1.0
    %v524 = vlog2.pop %v523
    %v525 = vmul.f32 %v524, 0.6931472
    %v526 = vmul.f32 -0.5, %v493
    %v527 = vadd.f32 %v526, 1.0
    %v528 = vmul.f32 %v527, %v493
    %v529 = vand.u32 2147483647, %v493
    %vm530 = vcmp.lt.f32.partialorder %v529, 0.0004427343
    %v531 = vsel %vm530, %v528, %v525
    %v532 = vadd.f32 %v495, 1.0
    %v533 = vlog2.pop %v532
    %v534 = vmul.f32 %v533, 0.6931472
    %v535 = vmul.f32 -0.5, %v495
    %v536 = vadd.f32 %v535, 1.0
    %v537 = vmul.f32 %v536, %v495
    %v538 = vand.u32 2147483647, %v495
    %vm539 = vcmp.lt.f32.partialorder %v538, 0.0004427343
    %v540 = vsel %vm539, %v537, %v534
    %v541 = vadd.f32 %v497, 1.0
    %v542 = vlog2.pop %v541
    %v543 = vmul.f32 %v542, 0.6931472
    %v544 = vmul.f32 -0.5, %v497
    %v545 = vadd.f32 %v544, 1.0
    %v546 = vmul.f32 %v545, %v497
    %v547 = vand.u32 2147483647, %v497
    %vm548 = vcmp.lt.f32.partialorder %v547, 0.0004427343
    %v549 = vsel %vm548, %v546, %v543
    %v550 = vadd.f32 %v499, 1.0
    %v551 = vlog2.pop %v550
    %v552 = vmul.f32 %v551, 0.6931472
    %v553 = vmul.f32 -0.5, %v499
    %v554 = vadd.f32 %v553, 1.0
    %v555 = vmul.f32 %v554, %v499
    %v556 = vand.u32 2147483647, %v499
    %vm557 = vcmp.lt.f32.partialorder %v556, 0.0004427343
    %v558 = vsel %vm557, %v555, %v552
    %v559 = vadd.f32 %v501, 1.0
    %v560 = vlog2.pop %v559
    %v561 = vmul.f32 %v560, 0.6931472
    %v562 = vmul.f32 -0.5, %v501
    %v563 = vadd.f32 %v562, 1.0
    %v564 = vmul.f32 %v563, %v501
    %v565 = vand.u32 2147483647, %v501
    %vm566 = vcmp.lt.f32.partialorder %v565, 0.0004427343
    %v567 = vsel %vm566, %v564, %v561
    %v568 = vadd.f32 %v503, 1.0
    %v569 = vlog2.pop %v568
    %v570 = vmul.f32 %v569, 0.6931472
    %v571 = vmul.f32 -0.5, %v503
    %v572 = vadd.f32 %v571, 1.0
    %v573 = vmul.f32 %v572, %v503
    %v574 = vand.u32 2147483647, %v503
    %vm575 = vcmp.lt.f32.partialorder %v574, 0.0004427343
    %v576 = vsel %vm575, %v573, %v570
    %v577 = vadd.f32 %v505, 1.0
    %v578 = vlog2.pop %v577
    %v579 = vmul.f32 %v578, 0.6931472
    %v580 = vmul.f32 -0.5, %v505
    %v581 = vadd.f32 %v580, 1.0
    %v582 = vmul.f32 %v581, %v505
    %v583 = vand.u32 2147483647, %v505
    %vm584 = vcmp.lt.f32.partialorder %v583, 0.0004427343
    %v585 = vsel %vm584, %v582, %v579
    %v586 = vmul.f32 %v522, 0.01
    %v587 = vmul.f32 %v531, 0.01
    %v588 = vmul.f32 %v540, 0.01
    %v589 = vmul.f32 %v549, 0.01
    %v590 = vmul.f32 %v558, 0.01
    %v591 = vmul.f32 %v567, 0.01
    %v592 = vmul.f32 %v576, 0.01
    %v593 = vmul.f32 %v585, 0.01
    %v594 = vsel %vm506, %v452, %v586
    %v595 = vsel %vm507, %v454, %v587
    %v596 = vsel %vm508, %v458, %v588
    %v597 = vsel %vm509, %v460, %v589
    %v598 = vsel %vm510, %v464, %v590
    %v599 = vsel %vm511, %v466, %v591
    %v600 = vsel %vm512, %v470, %v592
    %v601 = vsel %vm513, %v472, %v593
    %v602 = vld [vmem:[#allocation6] sm:$0xff]
    %v603 = vld [vmem:[#allocation6 + $0x8] sm:$0xff]
    %v604 = vld [vmem:[#allocation6 + $0x10] sm:$0xff]
    %v605 = vld [vmem:[#allocation6 + $0x18] sm:$0xff]
    %v606 = vld [vmem:[#allocation7] sm:$0xff]
    %v607 = vld [vmem:[#allocation7 + $0x8] sm:$0xff]
    %v608 = vld [vmem:[#allocation7 + $0x10] sm:$0xff]
    %v609 = vld [vmem:[#allocation7 + $0x18] sm:$0xff]
    %v611 = vsel %vm114, %v606, 0
    %v614 = vsel %vm114, %v607, 0
    %v617 = vsel %vm114, %v608, 0
    %v620 = vsel %vm114, %v609, 0
    %622 = vmatprep.subr.mxu0 %v85
    %623 = vmatpush1.msra.mxu0 %v84
    %624 = vmatprep.subr.mxu0 0.0
    %625 = vmatpush1.msra.mxu0 0.0
    %626 = vmatprep.subr.mxu0 0.0
    %627 = vmatpush1.msra.mxu0 0.0
    %628 = vmatprep.subr.mxu0 0.0
    %629 = vmatpush1.msra.mxu0 0.0
    %630 = vmatprep.subr.mxu0 0.0
    %631 = vmatpush1.msra.mxu0 0.0
    %632 = vmatprep.subr.mxu0 0.0
    %633 = vmatpush1.msra.mxu0 0.0
    %634 = vmatprep.subr.mxu0 0.0
    %635 = vmatpush1.msra.mxu0 0.0
    %636 = vmatprep.subr.mxu0 0.0
    %637 = vmatpush1.msra.mxu0 0.0
    %638 = vmatprep.subr.mxu0 0.0
    %639 = vmatpush1.msra.mxu0 0.0
    %640 = vmatprep.subr.mxu0 0.0
    %641 = vmatpush1.msra.mxu0 0.0
    %642 = vmatprep.subr.mxu0 0.0
    %643 = vmatpush1.msra.mxu0 0.0
    %644 = vmatprep.subr.mxu0 0.0
    %645 = vmatpush1.msra.mxu0 0.0
    %646 = vmatprep.subr.mxu0 0.0
    %647 = vmatpush1.msra.mxu0 0.0
    %648 = vmatprep.subr.mxu0 0.0
    %649 = vmatpush1.msra.mxu0 0.0
    %650 = vmatprep.subr.mxu0 0.0
    %651 = vmatpush1.msra.mxu0 0.0
    %652 = vmatprep.subr.mxu0 0.0
    %653 = vmatpush1.msra.mxu0 0.0
    %654 = vmatprep.subr.mxu0 0.0
    %655 = vmatpush1.msra.mxu0 0.0
    %656 = vmatprep.subr.mxu0 0.0
    %657 = vmatpush1.msra.mxu0 0.0
    %658 = vmatprep.subr.mxu0 0.0
    %659 = vmatpush1.msra.mxu0 0.0
    %660 = vmatprep.subr.mxu0 0.0
    %661 = vmatpush1.msra.mxu0 0.0
    %662 = vmatprep.subr.mxu0 0.0
    %663 = vmatpush1.msra.mxu0 0.0
    %664 = vmatprep.subr.mxu0 0.0
    %665 = vmatpush1.msra.mxu0 0.0
    %666 = vmatprep.subr.mxu0 0.0
    %667 = vmatpush1.msra.mxu0 0.0
    %668 = vmatprep.subr.mxu0 0.0
    %669 = vmatpush1.msra.mxu0 0.0
    %670 = vmatprep.subr.mxu0 0.0
    %671 = vmatpush1.msra.mxu0 0.0
    %672 = vmatprep.subr.mxu0 0.0
    %673 = vmatpush1.msra.mxu0 0.0
    %674 = vmatprep.subr.mxu0 0.0
    %675 = vmatpush1.msra.mxu0 0.0
    %676 = vmatprep.subr.mxu0 0.0
    %677 = vmatpush1.msra.mxu0 0.0
    %678 = vmatprep.subr.mxu0 0.0
    %679 = vmatpush1.msra.mxu0 0.0
    %680 = vmatprep.subr.mxu0 0.0
    %681 = vmatpush1.msra.mxu0 0.0
    %682 = vmatprep.subr.mxu0 0.0
    %683 = vmatpush1.msra.mxu0 0.0
    %684 = vmatprep.subr.mxu0 0.0
    %685 = vmatpush1.msra.mxu0 0.0
    %686 = vmatprep.mubr.f32.mxu0 0.0
    %687 = vmatmul.mubr.f32.gmra.mrb[0].mxu0 %v611
    %v688 = vpop.f32.mrb[0].mxu0
    %v689 = vadd.f32 0.0, %v688
    %v690 = vpop.f32.mrb[0].mxu0
    %v691 = vadd.f32 0.0, %v690
    %692 = vmatprep.mubr.f32.mxu0 0.0
    %693 = vmatmul.mubr.f32.gmra.mrb[0].mxu0 %v614
    %v694 = vpop.f32.mrb[0].mxu0
    %v695 = vadd.f32 0.0, %v694
    %v696 = vpop.f32.mrb[0].mxu0
    %v697 = vadd.f32 0.0, %v696
    %698 = vmatprep.mubr.f32.mxu0 0.0
    %699 = vmatmul.mubr.f32.gmra.mrb[0].mxu0 %v617
    %v700 = vpop.f32.mrb[0].mxu0
    %v701 = vadd.f32 0.0, %v700
    %v702 = vpop.f32.mrb[0].mxu0
    %v703 = vadd.f32 0.0, %v702
    %704 = vmatprep.mubr.f32.mxu0 0.0
    %705 = vmatmul.mubr.f32.gmra.mrb[0].mxu0 %v620
    %v706 = vpop.f32.mrb[0].mxu0
    %v707 = vadd.f32 0.0, %v706
    %v708 = vpop.f32.mrb[0].mxu0
    %v709 = vadd.f32 0.0, %v708
    %710 = vdwg.mxu0
    %vm711 = vcmask 220160
    %v713 = vsel %vm711, %v602, 0
    %v716 = vsel %vm711, %v603, 0
    %v719 = vsel %vm711, %v604, 0
    %v722 = vsel %vm711, %v605, 0
    %vm724 = vcmask 1042432
    %v726 = vsel %vm724, %v600, 0
    %v729 = vsel %vm724, %v601, 0
    %731 = vmatprep.subr.mxu0 %v595
    %732 = vmatpush1.msra.mxu0 %v594
    %733 = vmatprep.subr.mxu0 %v597
    %734 = vmatpush1.msra.mxu0 %v596
    %735 = vmatprep.subr.mxu0 %v599
    %736 = vmatpush1.msra.mxu0 %v598
    %737 = vmatprep.subr.mxu0 %v729
    %738 = vmatpush1.msra.mxu0 %v726
    %739 = vmatprep.subr.mxu0 0.0
    %740 = vmatpush1.msra.mxu0 0.0
    %741 = vmatprep.subr.mxu0 0.0
    %742 = vmatpush1.msra.mxu0 0.0
    %743 = vmatprep.subr.mxu0 0.0
    %744 = vmatpush1.msra.mxu0 0.0
    %745 = vmatprep.subr.mxu0 0.0
    %746 = vmatpush1.msra.mxu0 0.0
    %747 = vmatprep.subr.mxu0 0.0
    %748 = vmatpush1.msra.mxu0 0.0
    %749 = vmatprep.subr.mxu0 0.0
    %750 = vmatpush1.msra.mxu0 0.0
    %751 = vmatprep.subr.mxu0 0.0
    %752 = vmatpush1.msra.mxu0 0.0
    %753 = vmatprep.subr.mxu0 0.0
    %754 = vmatpush1.msra.mxu0 0.0
    %755 = vmatprep.subr.mxu0 0.0
    %756 = vmatpush1.msra.mxu0 0.0
    %757 = vmatprep.subr.mxu0 0.0
    %758 = vmatpush1.msra.mxu0 0.0
    %759 = vmatprep.subr.mxu0 0.0
    %760 = vmatpush1.msra.mxu0 0.0
    %761 = vmatprep.subr.mxu0 0.0
    %762 = vmatpush1.msra.mxu0 0.0
    %763 = vmatprep.subr.mxu0 0.0
    %764 = vmatpush1.msra.mxu0 0.0
    %765 = vmatprep.subr.mxu0 0.0
    %766 = vmatpush1.msra.mxu0 0.0
    %767 = vmatprep.subr.mxu0 0.0
    %768 = vmatpush1.msra.mxu0 0.0
    %769 = vmatprep.subr.mxu0 0.0
    %770 = vmatpush1.msra.mxu0 0.0
    %771 = vmatprep.subr.mxu0 0.0
    %772 = vmatpush1.msra.mxu0 0.0
    %773 = vmatprep.subr.mxu0 0.0
    %774 = vmatpush1.msra.mxu0 0.0
    %775 = vmatprep.subr.mxu0 0.0
    %776 = vmatpush1.msra.mxu0 0.0
    %777 = vmatprep.subr.mxu0 0.0
    %778 = vmatpush1.msra.mxu0 0.0
    %779 = vmatprep.subr.mxu0 0.0
    %780 = vmatpush1.msra.mxu0 0.0
    %781 = vmatprep.subr.mxu0 0.0
    %782 = vmatpush1.msra.mxu0 0.0
    %783 = vmatprep.subr.mxu0 0.0
    %784 = vmatpush1.msra.mxu0 0.0
    %785 = vmatprep.subr.mxu0 0.0
    %786 = vmatpush1.msra.mxu0 0.0
    %787 = vmatprep.subr.mxu0 0.0
    %788 = vmatpush1.msra.mxu0 0.0
    %789 = vmatprep.subr.mxu0 0.0
    %790 = vmatpush1.msra.mxu0 0.0
    %791 = vmatprep.subr.mxu0 0.0
    %792 = vmatpush1.msra.mxu0 0.0
    %793 = vmatprep.subr.mxu0 0.0
    %794 = vmatpush1.msra.mxu0 0.0
    %795 = vmatprep.mubr.f32.mxu0 0.0
    %796 = vmatmul.mubr.f32.gmra.mrb[0].mxu0 %v713
    %v797 = vpop.f32.mrb[0].mxu0
    %v798 = vadd.f32 %v689, %v797
    %v799 = vpop.f32.mrb[0].mxu0
    %v800 = vadd.f32 %v691, %v799
    %801 = vmatprep.mubr.f32.mxu0 0.0
    %802 = vmatmul.mubr.f32.gmra.mrb[0].mxu0 %v716
    %v803 = vpop.f32.mrb[0].mxu0
    %v804 = vadd.f32 %v695, %v803
    %v805 = vpop.f32.mrb[0].mxu0
    %v806 = vadd.f32 %v697, %v805
    %807 = vmatprep.mubr.f32.mxu0 0.0
    %808 = vmatmul.mubr.f32.gmra.mrb[0].mxu0 %v719
    %v809 = vpop.f32.mrb[0].mxu0
    %v810 = vadd.f32 %v701, %v809
    %v811 = vpop.f32.mrb[0].mxu0
    %v812 = vadd.f32 %v703, %v811
    %813 = vmatprep.mubr.f32.mxu0 0.0
    %814 = vmatmul.mubr.f32.gmra.mrb[0].mxu0 %v722
    %v815 = vpop.f32.mrb[0].mxu0
    %v816 = vadd.f32 %v707, %v815
    %v817 = vpop.f32.mrb[0].mxu0
    %v818 = vadd.f32 %v709, %v817
    %819 = vdwg.mxu0
    %820 = vset.pattern.permute.xlu0 2
    %821 = vperm.xlu0 %820, %v90
    %v822 = vpop.permute.xlu0 %821
    %824 = vset.pattern.permute.xlu0 2
    %825 = vperm.xlu0 %824, %v91
    %v826 = vpop.permute.xlu0 %825
    %828 = vset.pattern.permute.xlu0 2
    %829 = vperm.xlu0 %828, %v92
    %v830 = vpop.permute.xlu0 %829
    %832 = vset.pattern.permute.xlu0 2
    %833 = vperm.xlu0 %832, %v93
    %v834 = vpop.permute.xlu0 %833
    %v836 = vadd.f32 %v798, %v822
    %v837 = vadd.f32 %v800, %v822
    %v838 = vadd.f32 %v804, %v826
    %v839 = vadd.f32 %v806, %v826
    %v840 = vadd.f32 %v810, %v830
    %v841 = vadd.f32 %v812, %v830
    %v842 = vadd.f32 %v816, %v834
    %v843 = vadd.f32 %v818, %v834
    %v844 = vmul.f32 %v836, 100.0
    %v845 = vmul.f32 %v837, 100.0
    %v846 = vmul.f32 %v838, 100.0
    %v847 = vmul.f32 %v839, 100.0
    %v848 = vmul.f32 %v840, 100.0
    %v849 = vmul.f32 %v841, 100.0
    %v850 = vmul.f32 %v842, 100.0
    %v851 = vmul.f32 %v843, 100.0
    %v852 = vmin.f32 %v844, 20.0
    %v853 = vmin.f32 %v845, 20.0
    %v854 = vmin.f32 %v846, 20.0
    %v855 = vmin.f32 %v847, 20.0
    %v856 = vmin.f32 %v848, 20.0
    %v857 = vmin.f32 %v849, 20.0
    %v858 = vmin.f32 %v850, 20.0
    %v859 = vmin.f32 %v851, 20.0
    %v860 = vmul.f32 %v852, 1.442695
    %v861 = vpow.pop %v860
    %v862 = vmul.f32 %v853, 1.442695
    %v863 = vpow.pop %v862
    %v864 = vmul.f32 %v854, 1.442695
    %v865 = vpow.pop %v864
    %v866 = vmul.f32 %v855, 1.442695
    %v867 = vpow.pop %v866
    %v868 = vmul.f32 %v856, 1.442695
    %v869 = vpow.pop %v868
    %v870 = vmul.f32 %v857, 1.442695
    %v871 = vpow.pop %v870
    %v872 = vmul.f32 %v858, 1.442695
    %v873 = vpow.pop %v872
    %v874 = vmul.f32 %v859, 1.442695
    %v875 = vpow.pop %v874
    %vm876 = vcmp.gt.f32.partialorder %v844, 20.0
    %vm877 = vcmp.gt.f32.partialorder %v845, 20.0
    %vm878 = vcmp.gt.f32.partialorder %v846, 20.0
    %vm879 = vcmp.gt.f32.partialorder %v847, 20.0
    %vm880 = vcmp.gt.f32.partialorder %v848, 20.0
    %vm881 = vcmp.gt.f32.partialorder %v849, 20.0
    %vm882 = vcmp.gt.f32.partialorder %v850, 20.0
    %vm883 = vcmp.gt.f32.partialorder %v851, 20.0
    %v884 = vadd.f32 %v861, 1.0
    %v885 = vlog2.pop %v884
    %v886 = vmul.f32 %v885, 0.6931472
    %v887 = vmul.f32 -0.5, %v861
    %v888 = vadd.f32 %v887, 1.0
    %v889 = vmul.f32 %v888, %v861
    %v890 = vand.u32 2147483647, %v861
    %vm891 = vcmp.lt.f32.partialorder %v890, 0.0004427343
    %v892 = vsel %vm891, %v889, %v886
    %v893 = vadd.f32 %v863, 1.0
    %v894 = vlog2.pop %v893
    %v895 = vmul.f32 %v894, 0.6931472
    %v896 = vmul.f32 -0.5, %v863
    %v897 = vadd.f32 %v896, 1.0
    %v898 = vmul.f32 %v897, %v863
    %v899 = vand.u32 2147483647, %v863
    %vm900 = vcmp.lt.f32.partialorder %v899, 0.0004427343
    %v901 = vsel %vm900, %v898, %v895
    %v902 = vadd.f32 %v865, 1.0
    %v903 = vlog2.pop %v902
    %v904 = vmul.f32 %v903, 0.6931472
    %v905 = vmul.f32 -0.5, %v865
    %v906 = vadd.f32 %v905, 1.0
    %v907 = vmul.f32 %v906, %v865
    %v908 = vand.u32 2147483647, %v865
    %vm909 = vcmp.lt.f32.partialorder %v908, 0.0004427343
    %v910 = vsel %vm909, %v907, %v904
    %v911 = vadd.f32 %v867, 1.0
    %v912 = vlog2.pop %v911
    %v913 = vmul.f32 %v912, 0.6931472
    %v914 = vmul.f32 -0.5, %v867
    %v915 = vadd.f32 %v914, 1.0
    %v916 = vmul.f32 %v915, %v867
    %v917 = vand.u32 2147483647, %v867
    %vm918 = vcmp.lt.f32.partialorder %v917, 0.0004427343
    %v919 = vsel %vm918, %v916, %v913
    %v920 = vadd.f32 %v869, 1.0
    %v921 = vlog2.pop %v920
    %v922 = vmul.f32 %v921, 0.6931472
    %v923 = vmul.f32 -0.5, %v869
    %v924 = vadd.f32 %v923, 1.0
    %v925 = vmul.f32 %v924, %v869
    %v926 = vand.u32 2147483647, %v869
    %vm927 = vcmp.lt.f32.partialorder %v926, 0.0004427343
    %v928 = vsel %vm927, %v925, %v922
    %v929 = vadd.f32 %v871, 1.0
    %v930 = vlog2.pop %v929
    %v931 = vmul.f32 %v930, 0.6931472
    %v932 = vmul.f32 -0.5, %v871
    %v933 = vadd.f32 %v932, 1.0
    %v934 = vmul.f32 %v933, %v871
    %v935 = vand.u32 2147483647, %v871
    %vm936 = vcmp.lt.f32.partialorder %v935, 0.0004427343
    %v937 = vsel %vm936, %v934, %v931
    %v938 = vadd.f32 %v873, 1.0
    %v939 = vlog2.pop %v938
    %v940 = vmul.f32 %v939, 0.6931472
    %v941 = vmul.f32 -0.5, %v873
    %v942 = vadd.f32 %v941, 1.0
    %v943 = vmul.f32 %v942, %v873
    %v944 = vand.u32 2147483647, %v873
    %vm945 = vcmp.lt.f32.partialorder %v944, 0.0004427343
    %v946 = vsel %vm945, %v943, %v940
    %v947 = vadd.f32 %v875, 1.0
    %v948 = vlog2.pop %v947
    %v949 = vmul.f32 %v948, 0.6931472
    %v950 = vmul.f32 -0.5, %v875
    %v951 = vadd.f32 %v950, 1.0
    %v952 = vmul.f32 %v951, %v875
    %v953 = vand.u32 2147483647, %v875
    %vm954 = vcmp.lt.f32.partialorder %v953, 0.0004427343
    %v955 = vsel %vm954, %v952, %v949
    %v956 = vmul.f32 %v892, 0.01
    %v957 = vmul.f32 %v901, 0.01
    %v958 = vmul.f32 %v910, 0.01
    %v959 = vmul.f32 %v919, 0.01
    %v960 = vmul.f32 %v928, 0.01
    %v961 = vmul.f32 %v937, 0.01
    %v962 = vmul.f32 %v946, 0.01
    %v963 = vmul.f32 %v955, 0.01
    %v964 = vsel %vm876, %v836, %v956
    %v965 = vsel %vm877, %v837, %v957
    %v966 = vsel %vm878, %v838, %v958
    %v967 = vsel %vm879, %v839, %v959
    %v968 = vsel %vm880, %v840, %v960
    %v969 = vsel %vm881, %v841, %v961
    %v970 = vsel %vm882, %v842, %v962
    %v971 = vsel %vm883, %v843, %v963
    %v972 = vld [vmem:[%s5] sm:$0xff]
    %v973 = vld [vmem:[%s5 + $0x8] sm:$0xff]
    %v974 = vld [vmem:[%s5 + $0x10] sm:$0xff]
    %v975 = vld [vmem:[%s5 + $0x18] sm:$0xff]
    %976 = vset.pattern.permute.xlu0 3
    %977 = vperm.xlu0 %976, %v90
    %v978 = vpop.permute.xlu0 %977
    %980 = vset.pattern.permute.xlu0 3
    %981 = vperm.xlu0 %980, %v91
    %v982 = vpop.permute.xlu0 %981
    %984 = vset.pattern.permute.xlu0 3
    %985 = vperm.xlu0 %984, %v92
    %v986 = vpop.permute.xlu0 %985
    %988 = vset.pattern.permute.xlu0 3
    %989 = vperm.xlu0 %988, %v93
    %v990 = vpop.permute.xlu0 %989
    %v993 = vsel %vm372, %v972, 0
    %v996 = vsel %vm372, %v973, 0
    %v999 = vsel %vm372, %v974, 0
    %v1002 = vsel %vm372, %v975, 0
    %1004 = vmatprep.subr.mxu0 %v965
    %1005 = vmatpush1.msra.mxu0 %v964
    %1006 = vmatprep.subr.mxu0 %v967
    %1007 = vmatpush1.msra.mxu0 %v966
    %1008 = vmatprep.subr.mxu0 %v969
    %1009 = vmatpush1.msra.mxu0 %v968
    %1010 = vmatprep.subr.mxu0 %v971
    %1011 = vmatpush1.msra.mxu0 %v970
    %1012 = vmatprep.subr.mxu0 0.0
    %1013 = vmatpush1.msra.mxu0 0.0
    %1014 = vmatprep.subr.mxu0 0.0
    %1015 = vmatpush1.msra.mxu0 0.0
    %1016 = vmatprep.subr.mxu0 0.0
    %1017 = vmatpush1.msra.mxu0 0.0
    %1018 = vmatprep.subr.mxu0 0.0
    %1019 = vmatpush1.msra.mxu0 0.0
    %1020 = vmatprep.subr.mxu0 0.0
    %1021 = vmatpush1.msra.mxu0 0.0
    %1022 = vmatprep.subr.mxu0 0.0
    %1023 = vmatpush1.msra.mxu0 0.0
    %1024 = vmatprep.subr.mxu0 0.0
    %1025 = vmatpush1.msra.mxu0 0.0
    %1026 = vmatprep.subr.mxu0 0.0
    %1027 = vmatpush1.msra.mxu0 0.0
    %1028 = vmatprep.subr.mxu0 0.0
    %1029 = vmatpush1.msra.mxu0 0.0
    %1030 = vmatprep.subr.mxu0 0.0
    %1031 = vmatpush1.msra.mxu0 0.0
    %1032 = vmatprep.subr.mxu0 0.0
    %1033 = vmatpush1.msra.mxu0 0.0
    %1034 = vmatprep.subr.mxu0 0.0
    %1035 = vmatpush1.msra.mxu0 0.0
    %1036 = vmatprep.subr.mxu0 0.0
    %1037 = vmatpush1.msra.mxu0 0.0
    %1038 = vmatprep.subr.mxu0 0.0
    %1039 = vmatpush1.msra.mxu0 0.0
    %1040 = vmatprep.subr.mxu0 0.0
    %1041 = vmatpush1.msra.mxu0 0.0
    %1042 = vmatprep.subr.mxu0 0.0
    %1043 = vmatpush1.msra.mxu0 0.0
    %1044 = vmatprep.subr.mxu0 0.0
    %1045 = vmatpush1.msra.mxu0 0.0
    %1046 = vmatprep.subr.mxu0 0.0
    %1047 = vmatpush1.msra.mxu0 0.0
    %1048 = vmatprep.subr.mxu0 0.0
    %1049 = vmatpush1.msra.mxu0 0.0
    %1050 = vmatprep.subr.mxu0 0.0
    %1051 = vmatpush1.msra.mxu0 0.0
    %1052 = vmatprep.subr.mxu0 0.0
    %1053 = vmatpush1.msra.mxu0 0.0
    %1054 = vmatprep.subr.mxu0 0.0
    %1055 = vmatpush1.msra.mxu0 0.0
    %1056 = vmatprep.subr.mxu0 0.0
    %1057 = vmatpush1.msra.mxu0 0.0
    %1058 = vmatprep.subr.mxu0 0.0
    %1059 = vmatpush1.msra.mxu0 0.0
    %1060 = vmatprep.subr.mxu0 0.0
    %1061 = vmatpush1.msra.mxu0 0.0
    %1062 = vmatprep.subr.mxu0 0.0
    %1063 = vmatpush1.msra.mxu0 0.0
    %1064 = vmatprep.subr.mxu0 0.0
    %1065 = vmatpush1.msra.mxu0 0.0
    %1066 = vmatprep.subr.mxu0 0.0
    %1067 = vmatpush1.msra.mxu0 0.0
    %1068 = vmatprep.mubr.f32.mxu0 0.0
    %1069 = vmatmul.mubr.f32.gmra.mrb[0].mxu0 %v993
    %v1070 = vpop.f32.mrb[0].mxu0
    %v1071 = vadd.f32 %v978, %v1070
    %v1072 = vpop.f32.mrb[0].mxu0
    %v1073 = vadd.f32 %v978, %v1072
    %1074 = vmatprep.mubr.f32.mxu0 0.0
    %1075 = vmatmul.mubr.f32.gmra.mrb[0].mxu0 %v996
    %v1076 = vpop.f32.mrb[0].mxu0
    %v1077 = vadd.f32 %v982, %v1076
    %v1078 = vpop.f32.mrb[0].mxu0
    %v1079 = vadd.f32 %v982, %v1078
    %1080 = vmatprep.mubr.f32.mxu0 0.0
    %1081 = vmatmul.mubr.f32.gmra.mrb[0].mxu0 %v999
    %v1082 = vpop.f32.mrb[0].mxu0
    %v1083 = vadd.f32 %v986, %v1082
    %v1084 = vpop.f32.mrb[0].mxu0
    %v1085 = vadd.f32 %v986, %v1084
    %1086 = vmatprep.mubr.f32.mxu0 0.0
    %1087 = vmatmul.mubr.f32.gmra.mrb[0].mxu0 %v1002
    %v1088 = vpop.f32.mrb[0].mxu0
    %v1089 = vadd.f32 %v990, %v1088
    %v1090 = vpop.f32.mrb[0].mxu0
    %v1091 = vadd.f32 %v990, %v1090
    %1092 = vdwg.mxu0
    %v1093 = vmul.f32 %v1071, 100.0
    %v1094 = vmul.f32 %v1073, 100.0
    %v1095 = vmul.f32 %v1077, 100.0
    %v1096 = vmul.f32 %v1079, 100.0
    %v1097 = vmul.f32 %v1083, 100.0
    %v1098 = vmul.f32 %v1085, 100.0
    %v1099 = vmul.f32 %v1089, 100.0
    %v1100 = vmul.f32 %v1091, 100.0
    %v1101 = vmin.f32 %v1093, 20.0
    %v1102 = vmin.f32 %v1094, 20.0
    %v1103 = vmin.f32 %v1095, 20.0
    %v1104 = vmin.f32 %v1096, 20.0
    %v1105 = vmin.f32 %v1097, 20.0
    %v1106 = vmin.f32 %v1098, 20.0
    %v1107 = vmin.f32 %v1099, 20.0
    %v1108 = vmin.f32 %v1100, 20.0
    %v1109 = vmul.f32 %v1101, 1.442695
    %v1110 = vpow.pop %v1109
    %v1111 = vmul.f32 %v1102, 1.442695
    %v1112 = vpow.pop %v1111
    %v1113 = vmul.f32 %v1103, 1.442695
    %v1114 = vpow.pop %v1113
    %v1115 = vmul.f32 %v1104, 1.442695
    %v1116 = vpow.pop %v1115
    %v1117 = vmul.f32 %v1105, 1.442695
    %v1118 = vpow.pop %v1117
    %v1119 = vmul.f32 %v1106, 1.442695
    %v1120 = vpow.pop %v1119
    %v1121 = vmul.f32 %v1107, 1.442695
    %v1122 = vpow.pop %v1121
    %v1123 = vmul.f32 %v1108, 1.442695
    %v1124 = vpow.pop %v1123
    %vm1125 = vcmp.gt.f32.partialorder %v1093, 20.0
    %vm1126 = vcmp.gt.f32.partialorder %v1094, 20.0
    %vm1127 = vcmp.gt.f32.partialorder %v1095, 20.0
    %vm1128 = vcmp.gt.f32.partialorder %v1096, 20.0
    %vm1129 = vcmp.gt.f32.partialorder %v1097, 20.0
    %vm1130 = vcmp.gt.f32.partialorder %v1098, 20.0
    %vm1131 = vcmp.gt.f32.partialorder %v1099, 20.0
    %vm1132 = vcmp.gt.f32.partialorder %v1100, 20.0
    %v1133 = vadd.f32 %v1110, 1.0
    %v1134 = vlog2.pop %v1133
    %v1135 = vmul.f32 %v1134, 0.6931472
    %v1136 = vmul.f32 -0.5, %v1110
    %v1137 = vadd.f32 %v1136, 1.0
    %v1138 = vmul.f32 %v1137, %v1110
    %v1139 = vand.u32 2147483647, %v1110
    %vm1140 = vcmp.lt.f32.partialorder %v1139, 0.0004427343
    %v1141 = vsel %vm1140, %v1138, %v1135
    %v1142 = vadd.f32 %v1112, 1.0
    %v1143 = vlog2.pop %v1142
    %v1144 = vmul.f32 %v1143, 0.6931472
    %v1145 = vmul.f32 -0.5, %v1112
    %v1146 = vadd.f32 %v1145, 1.0
    %v1147 = vmul.f32 %v1146, %v1112
    %v1148 = vand.u32 2147483647, %v1112
    %vm1149 = vcmp.lt.f32.partialorder %v1148, 0.0004427343
    %v1150 = vsel %vm1149, %v1147, %v1144
    %v1151 = vadd.f32 %v1114, 1.0
    %v1152 = vlog2.pop %v1151
    %v1153 = vmul.f32 %v1152, 0.6931472
    %v1154 = vmul.f32 -0.5, %v1114
    %v1155 = vadd.f32 %v1154, 1.0
    %v1156 = vmul.f32 %v1155, %v1114
    %v1157 = vand.u32 2147483647, %v1114
    %vm1158 = vcmp.lt.f32.partialorder %v1157, 0.0004427343
    %v1159 = vsel %vm1158, %v1156, %v1153
    %v1160 = vadd.f32 %v1116, 1.0
    %v1161 = vlog2.pop %v1160
    %v1162 = vmul.f32 %v1161, 0.6931472
    %v1163 = vmul.f32 -0.5, %v1116
    %v1164 = vadd.f32 %v1163, 1.0
    %v1165 = vmul.f32 %v1164, %v1116
    %v1166 = vand.u32 2147483647, %v1116
    %vm1167 = vcmp.lt.f32.partialorder %v1166, 0.0004427343
    %v1168 = vsel %vm1167, %v1165, %v1162
    %v1169 = vadd.f32 %v1118, 1.0
    %v1170 = vlog2.pop %v1169
    %v1171 = vmul.f32 %v1170, 0.6931472
    %v1172 = vmul.f32 -0.5, %v1118
    %v1173 = vadd.f32 %v1172, 1.0
    %v1174 = vmul.f32 %v1173, %v1118
    %v1175 = vand.u32 2147483647, %v1118
    %vm1176 = vcmp.lt.f32.partialorder %v1175, 0.0004427343
    %v1177 = vsel %vm1176, %v1174, %v1171
    %v1178 = vadd.f32 %v1120, 1.0
    %v1179 = vlog2.pop %v1178
    %v1180 = vmul.f32 %v1179, 0.6931472
    %v1181 = vmul.f32 -0.5, %v1120
    %v1182 = vadd.f32 %v1181, 1.0
    %v1183 = vmul.f32 %v1182, %v1120
    %v1184 = vand.u32 2147483647, %v1120
    %vm1185 = vcmp.lt.f32.partialorder %v1184, 0.0004427343
    %v1186 = vsel %vm1185, %v1183, %v1180
    %v1187 = vadd.f32 %v1122, 1.0
    %v1188 = vlog2.pop %v1187
    %v1189 = vmul.f32 %v1188, 0.6931472
    %v1190 = vmul.f32 -0.5, %v1122
    %v1191 = vadd.f32 %v1190, 1.0
    %v1192 = vmul.f32 %v1191, %v1122
    %v1193 = vand.u32 2147483647, %v1122
    %vm1194 = vcmp.lt.f32.partialorder %v1193, 0.0004427343
    %v1195 = vsel %vm1194, %v1192, %v1189
    %v1196 = vadd.f32 %v1124, 1.0
    %v1197 = vlog2.pop %v1196
    %v1198 = vmul.f32 %v1197, 0.6931472
    %v1199 = vmul.f32 -0.5, %v1124
    %v1200 = vadd.f32 %v1199, 1.0
    %v1201 = vmul.f32 %v1200, %v1124
    %v1202 = vand.u32 2147483647, %v1124
    %vm1203 = vcmp.lt.f32.partialorder %v1202, 0.0004427343
    %v1204 = vsel %vm1203, %v1201, %v1198
    %v1205 = vmul.f32 %v1141, 0.01
    %v1206 = vmul.f32 %v1150, 0.01
    %v1207 = vmul.f32 %v1159, 0.01
    %v1208 = vmul.f32 %v1168, 0.01
    %v1209 = vmul.f32 %v1177, 0.01
    %v1210 = vmul.f32 %v1186, 0.01
    %v1211 = vmul.f32 %v1195, 0.01
    %v1212 = vmul.f32 %v1204, 0.01
    %v1213 = vsel %vm1125, %v1071, %v1205
    %v1214 = vsel %vm1126, %v1073, %v1206
    %v1215 = vsel %vm1127, %v1077, %v1207
    %v1216 = vsel %vm1128, %v1079, %v1208
    %v1217 = vsel %vm1129, %v1083, %v1209
    %v1218 = vsel %vm1130, %v1085, %v1210
    %v1219 = vsel %vm1131, %v1089, %v1211
    %v1220 = vsel %vm1132, %v1091, %v1212
    %v1221 = vld [vmem:[%s6] sm:$0xff]
    %v1222 = vld [vmem:[%s7] sm:$0xff]
    %1224 = vset.pattern.permute.xlu0 4
    %1225 = vperm.xlu0 %1224, %v1222
    %v1226 = vpop.permute.xlu0 %1225
    %v1229 = vsel %vm372, %v1221, 0
    %1231 = vmatprep.subr.mxu0 %v1214
    %1232 = vmatpush1.msra.mxu0 %v1213
    %1233 = vmatprep.subr.mxu0 %v1216
    %1234 = vmatpush1.msra.mxu0 %v1215
    %1235 = vmatprep.subr.mxu0 %v1218
    %1236 = vmatpush1.msra.mxu0 %v1217
    %1237 = vmatprep.subr.mxu0 %v1220
    %1238 = vmatpush1.msra.mxu0 %v1219
    %1239 = vmatprep.subr.mxu0 0.0
    %1240 = vmatpush1.msra.mxu0 0.0
    %1241 = vmatprep.subr.mxu0 0.0
    %1242 = vmatpush1.msra.mxu0 0.0
    %1243 = vmatprep.subr.mxu0 0.0
    %1244 = vmatpush1.msra.mxu0 0.0
    %1245 = vmatprep.subr.mxu0 0.0
    %1246 = vmatpush1.msra.mxu0 0.0
    %1247 = vmatprep.subr.mxu0 0.0
    %1248 = vmatpush1.msra.mxu0 0.0
    %1249 = vmatprep.subr.mxu0 0.0
    %1250 = vmatpush1.msra.mxu0 0.0
    %1251 = vmatprep.subr.mxu0 0.0
    %1252 = vmatpush1.msra.mxu0 0.0
    %1253 = vmatprep.subr.mxu0 0.0
    %1254 = vmatpush1.msra.mxu0 0.0
    %1255 = vmatprep.subr.mxu0 0.0
    %1256 = vmatpush1.msra.mxu0 0.0
    %1257 = vmatprep.subr.mxu0 0.0
    %1258 = vmatpush1.msra.mxu0 0.0
    %1259 = vmatprep.subr.mxu0 0.0
    %1260 = vmatpush1.msra.mxu0 0.0
    %1261 = vmatprep.subr.mxu0 0.0
    %1262 = vmatpush1.msra.mxu0 0.0
    %1263 = vmatprep.subr.mxu0 0.0
    %1264 = vmatpush1.msra.mxu0 0.0
    %1265 = vmatprep.subr.mxu0 0.0
    %1266 = vmatpush1.msra.mxu0 0.0
    %1267 = vmatprep.subr.mxu0 0.0
    %1268 = vmatpush1.msra.mxu0 0.0
    %1269 = vmatprep.subr.mxu0 0.0
    %1270 = vmatpush1.msra.mxu0 0.0
    %1271 = vmatprep.subr.mxu0 0.0
    %1272 = vmatpush1.msra.mxu0 0.0
    %1273 = vmatprep.subr.mxu0 0.0
    %1274 = vmatpush1.msra.mxu0 0.0
    %1275 = vmatprep.subr.mxu0 0.0
    %1276 = vmatpush1.msra.mxu0 0.0
    %1277 = vmatprep.subr.mxu0 0.0
    %1278 = vmatpush1.msra.mxu0 0.0
    %1279 = vmatprep.subr.mxu0 0.0
    %1280 = vmatpush1.msra.mxu0 0.0
    %1281 = vmatprep.subr.mxu0 0.0
    %1282 = vmatpush1.msra.mxu0 0.0
    %1283 = vmatprep.subr.mxu0 0.0
    %1284 = vmatpush1.msra.mxu0 0.0
    %1285 = vmatprep.subr.mxu0 0.0
    %1286 = vmatpush1.msra.mxu0 0.0
    %1287 = vmatprep.subr.mxu0 0.0
    %1288 = vmatpush1.msra.mxu0 0.0
    %1289 = vmatprep.subr.mxu0 0.0
    %1290 = vmatpush1.msra.mxu0 0.0
    %1291 = vmatprep.subr.mxu0 0.0
    %1292 = vmatpush1.msra.mxu0 0.0
    %1293 = vmatprep.subr.mxu0 0.0
    %1294 = vmatpush1.msra.mxu0 0.0
    %1295 = vmatprep.mubr.f32.mxu0 0.0
    %1296 = vmatmul.mubr.f32.gmra.mrb[0].mxu0 %v1229
    %v1297 = vpop.f32.mrb[0].mxu0
    %v1298 = vadd.f32 %v1226, %v1297
    %v1299 = vpop.f32.mrb[0].mxu0
    %v1300 = vadd.f32 %v1226, %v1299
    %1301 = vdwg.mxu0
    %1302 = vst [vmem:[%s8] sm:$0xff] %v1298
    %1303 = vst [vmem:[%s8 + $0x8] sm:$0xff] %v1300
    // Predicated region
    $region50: #{forward.1} parent=1 // pred_check
      _
    $region51: #{forward.1} parent=1 // pred_check_branch
      %1305 = sbr.rel (0) target = $region53
    $region52: #{forward.1} parent=1 // pred_region
      _
    $region53: #{forward.1} parent=1 // pred_fallthru
      _
    // Predicated region
    $region54: #{forward.1} parent=1 // pred_check
      _
    $region55: #{forward.1} parent=1 // pred_check_branch
      %1307 = sbr.rel (0) target = $region57
    $region56: #{forward.1} parent=1 // pred_region
      _
    $region57: #{forward.1} parent=1 // pred_fallthru
      _
    %1308 = vsyncpa [#allocation3], 1
    %1309 = vsyncpa [#allocation5], 1
    %1310 = vsyncpa [#allocation8], 1

</llo_original>
